<compile_context>
chip_gen: v6e
topology: v6e:2x2x1
jax: 0.10.0
libtpu: 0.0.40
codegen_flags: <defaults>
</compile_context>

<pallas_src>
import functools

import jax
import jax.numpy as jnp
from jax.experimental import pallas as pl
from jax.experimental.pallas import tpu as pltpu


_MAX_TM = 256    # M tile cap (multiple of 8;  256 matches v6e/v7x MXU width)
_MAX_TN = 256    # N tile cap (multiple of 128)
_MAX_TK = 2048   # K tile cap (multiple of 128)


def _round_up(x, m):
    return -(-x // m) * m


def _plan_dim(dim, max_tile, align):
    """Pick (tile, padded_dim) with padded_dim % tile == 0 and an aligned tile."""
    padded = _round_up(dim, align)
    if padded <= max_tile:
        return padded, padded
    return max_tile, _round_up(dim, max_tile)


def _head_matmul_kernel(x_ref, w_ref, b_ref, o_ref, acc_ref):
    # x_ref: (tm, tk)   w_ref: (tk, tn)   b_ref: (1, tn)   o_ref: (tm, tn)
    # Grid axes: (M-or-var tiles, N tiles, K tiles); K (reduction) is last.
    k = pl.program_id(2)

    @pl.when(k == 0)
    def _init():
        acc_ref[...] = jnp.zeros_like(acc_ref)

    acc_ref[...] += jnp.dot(
        x_ref[...], w_ref[...], preferred_element_type=jnp.float32)

    @pl.when(k == pl.num_programs(2) - 1)
    def _finalize():
        o_ref[...] = (acc_ref[...] + b_ref[...]).astype(o_ref.dtype)


@functools.partial(jax.jit, static_argnames=("individual", "compute_dtype"))
def flatten_head_tcn_forward(x, z_tcn, weight, bias, *, individual,
                             compute_dtype=jnp.bfloat16):
    """x: [bs, n_vars, d_model, patch_num], z_tcn: [bs, n_vars, tcn_dim]
       weight: [n_vars or 1, nf, tw], bias: [n_vars or 1, tw]   (nf = d_model*patch_num + tcn_dim)
       returns [bs, n_vars, tw]."""
    bs, n_vars, d_model, patch_num = x.shape
    nf_patch = d_model * patch_num
    tcn_dim = z_tcn.shape[-1]
    K = nf_patch + tcn_dim
    n_heads, K_w, N = weight.shape
    assert K_w == K
    assert bias.shape == (n_heads, N)
    assert n_heads == (n_vars if individual else 1)
    out_dtype = x.dtype

    # flatten(start_dim=-2) + concat z_tcn on the feature axis -> [bs, n_vars, K]
    xz = jnp.concatenate([x.reshape(bs, n_vars, nf_patch), z_tcn], axis=-1)

    tn, Np = _plan_dim(N, _MAX_TN, 128)   # lane-dense, 128-aligned output
    tk, Kp = _plan_dim(K, _MAX_TK, 128)   # 128-aligned K tiles

    w_p = jnp.pad(weight.astype(compute_dtype),
                  ((0, 0), (0, Kp - K), (0, Np - N)))            # [heads, Kp, Np]
    b_p = jnp.pad(bias.astype(jnp.float32),
                  ((0, 0), (0, Np - N)))[:, None, :]             # [heads, 1, Np]

    cparams = pltpu.CompilerParams(
        dimension_semantics=("parallel", "parallel", "arbitrary"),
        vmem_limit_bytes=32 * 1024 * 1024,
    )

    if not individual:
        # ---- shared head: one flat (bs*n_vars, K) @ (K, N) tiled matmul ----
        M = bs * n_vars
        tm, Mp = _plan_dim(M, _MAX_TM, 8)
        x2d = jnp.pad(xz.reshape(M, K).astype(compute_dtype),
                      ((0, Mp - M), (0, Kp - K)))                # [Mp, Kp]

        out = pl.pallas_call(
            _head_matmul_kernel,
            out_shape=jax.ShapeDtypeStruct((Mp, Np), out_dtype),
            grid=(Mp // tm, Np // tn, Kp // tk),
            in_specs=[
                pl.BlockSpec((tm, tk), lambda i, j, k: (i, k)),
                pl.BlockSpec((None, tk, tn), lambda i, j, k: (0, k, j)),
                pl.BlockSpec((None, 1, tn), lambda i, j, k: (0, 0, j)),
            ],
            out_specs=pl.BlockSpec((tm, tn), lambda i, j, k: (i, j)),
            scratch_shapes=[pltpu.VMEM((tm, tn), jnp.float32)],
            compiler_params=cparams,
        )(x2d, w_p, b_p)
        return out[:M, :N].reshape(bs, n_vars, N)

    # ---- individual head: per-variable weights, grid over (n_vars, N tiles, K tiles) ----
    # Var-major layout keeps every block's last-two dims either full-extent or (8,128)-aligned.
    x_vm = jnp.pad(xz.transpose(1, 0, 2).astype(compute_dtype),
                   ((0, 0), (0, 0), (0, Kp - K)))                # [n_vars, bs, Kp]

    out = pl.pallas_call(
        _head_matmul_kernel,
        out_shape=jax.ShapeDtypeStruct((n_vars, bs, Np), out_dtype),
        grid=(n_vars, Np // tn, Kp // tk),
        in_specs=[
            pl.BlockSpec((None, bs, tk), lambda v, j, k: (v, 0, k)),
            pl.BlockSpec((None, tk, tn), lambda v, j, k: (v, k, j)),
            pl.BlockSpec((None, 1, tn), lambda v, j, k: (v, 0, j)),
        ],
        out_specs=pl.BlockSpec((None, bs, tn), lambda v, j, k: (v, 0, j)),
        scratch_shapes=[pltpu.VMEM((bs, tn), jnp.float32)],
        compiler_params=cparams,
    )(x_vm, w_p, b_p)
    # [n_vars, bs, N] -> [bs, n_vars, N]
    # TODO(synk): fuse this small output transpose into the downstream consumer (RevIN denorm).
    return out[:, :, :N].transpose(1, 0, 2)


def init_params(key, n_vars, nf, target_window, individual):
    """PyTorch-style nn.Linear init: U(-1/sqrt(nf), 1/sqrt(nf)); weight stored [heads, nf, tw]."""
    n_heads = n_vars if individual else 1
    kw, kb = jax.random.split(key)
    bound = 1.0 / float(nf) ** 0.5
    weight = jax.random.uniform(
        kw, (n_heads, nf, target_window), jnp.float32, -bound, bound)
    bias = jax.random.uniform(
        kb, (n_heads, target_window), jnp.float32, -bound, bound)
    return weight, bias


if __name__ == "__main__":
    key = jax.random.PRNGKey(0)
    bs, n_vars, d_model, patch_num = 2, 4, 16, 8
    tcn_dim = 64
    target_window = 32
    nf = d_model * patch_num + tcn_dim          # head_nf = d_model*patch_num + tcn_output_dim

    kx, kz, kp = jax.random.split(key, 3)
    x = jax.random.normal(kx, (bs, n_vars, d_model, patch_num), jnp.float32)
    z_tcn = jax.random.normal(kz, (bs, n_vars, tcn_dim), jnp.float32)

    xz_ref = jnp.concatenate(
        [x.reshape(bs, n_vars, d_model * patch_num), z_tcn], axis=-1)

    # --- shared head (individual=False) ---
    w_s, b_s = init_params(kp, n_vars, nf, target_window, individual=False)
    ref_s = jnp.einsum("bvk,kt->bvt", xz_ref, w_s[0]) + b_s[0]

    out_s_f32 = flatten_head_tcn_forward(
        x, z_tcn, w_s, b_s, individual=False, compute_dtype=jnp.float32)
    jax.block_until_ready(out_s_f32)
    assert out_s_f32.shape == (bs, n_vars, target_window)
    assert jnp.allclose(out_s_f32, ref_s, atol=1e-4, rtol=1e-4)

    out_s_bf16 = flatten_head_tcn_forward(x, z_tcn, w_s, b_s, individual=False)
    jax.block_until_ready(out_s_bf16)
    assert out_s_bf16.shape == (bs, n_vars, target_window)
    assert jnp.allclose(out_s_bf16, ref_s, atol=3e-2, rtol=3e-2)

    # --- individual head (per-variable linears) ---
    w_i, b_i = init_params(kp, n_vars, nf, target_window, individual=True)
    ref_i = jnp.einsum("bvk,vkt->bvt", xz_ref, w_i) + b_i[None, :, :]

    out_i_f32 = flatten_head_tcn_forward(
        x, z_tcn, w_i, b_i, individual=True, compute_dtype=jnp.float32)
    jax.block_until_ready(out_i_f32)
    assert out_i_f32.shape == (bs, n_vars, target_window)
    assert jnp.allclose(out_i_f32, ref_i, atol=1e-4, rtol=1e-4)

    out_i_bf16 = flatten_head_tcn_forward(x, z_tcn, w_i, b_i, individual=True)
    jax.block_until_ready(out_i_bf16)
    assert out_i_bf16.shape == (bs, n_vars, target_window)
    assert jnp.allclose(out_i_bf16, ref_i, atol=3e-2, rtol=3e-2)

    print("KERNEL_OK")
</pallas_src>

<mosaic_0001>
module attributes {stable_mosaic.version = 11 : i64} {
  func.func @_head_matmul_kernel(%arg0: i32, %arg1: i32, %arg2: i32, %arg3: memref<8x256xf32, #tpu.memory_space<vmem>>, %arg4: memref<1x256x128xf32, #tpu.memory_space<vmem>>, %arg5: memref<1x1x128xf32, #tpu.memory_space<vmem>>, %arg6: memref<8x128xf32, #tpu.memory_space<vmem>>, %arg7: memref<8x128xf32, #tpu.memory_space<vmem>>) attributes {dimension_semantics = [#tpu.dimension_semantics<parallel>, #tpu.dimension_semantics<parallel>, #tpu.dimension_semantics<arbitrary>], iteration_bounds = array<i64: 1, 1, 1>, scalar_prefetch = 0 : i64, scratch_operands = 1 : i64, tpu.core_type = #tpu.core_type<tc>, window_params = [{transform_indices = @transform_0, window_bounds = array<i64: 8, 256>}, {transform_indices = @transform_1, window_bounds = array<i64: 1, 256, 128>}, {transform_indices = @transform_2, window_bounds = array<i64: 1, 1, 128>}, {transform_indices = @transform_3, window_bounds = array<i64: 8, 128>}]} {
    %c0_i32 = arith.constant 0 : i32
    %0 = arith.cmpi eq, %arg2, %c0_i32 : i32
    %1 = arith.extui %0 : i1 to i32
    %c0_i32_0 = arith.constant 0 : i32
    %2 = arith.cmpi ne, %1, %c0_i32_0 : i32
    scf.if %2 {
      %cst_11 = arith.constant 0.000000e+00 : f32
      %13 = vector.broadcast %cst_11 : f32 to vector<8x128xf32>
      %c0_12 = arith.constant 0 : index
      %c0_13 = arith.constant 0 : index
      %14 = vector.load %arg7[%c0_12, %c0_13] : memref<8x128xf32, #tpu.memory_space<vmem>>, vector<8x128xf32>
      tpu.vector_store %arg7[%c0_12, %c0_13], %13 {strides = array<i32>} : memref<8x128xf32, #tpu.memory_space<vmem>>, vector<8x128xf32>,
    } else {
    }
    %c0 = arith.constant 0 : index
    %c0_1 = arith.constant 0 : index
    %3 = vector.load %arg7[%c0, %c0_1] : memref<8x128xf32, #tpu.memory_space<vmem>>, vector<8x128xf32>
    %c0_2 = arith.constant 0 : index
    %c0_3 = arith.constant 0 : index
    %4 = vector.load %arg3[%c0_2, %c0_3] : memref<8x256xf32, #tpu.memory_space<vmem>>, vector<8x256xf32>
    %c0_4 = arith.constant 0 : index
    %c0_5 = arith.constant 0 : index
    %c0_6 = arith.constant 0 : index
    %5 = vector.load %arg4[%c0_4, %c0_5, %c0_6] : memref<1x256x128xf32, #tpu.memory_space<vmem>>, vector<1x256x128xf32>
    %6 = vector.shape_cast %5 : vector<1x256x128xf32> to vector<256x128xf32>
    %cst = arith.constant dense<0.000000e+00> : vector<8x128xf32>
    %7 = tpu.matmul %4, %6, %cst {dimension_numbers = #tpu.dot_dimension_numbers<[1], [0], [0], [1], [0, 0, 1, 1], [], []>} : vector<8x256xf32>, vector<256x128xf32>, vector<8x128xf32> -> vector<8x128xf32>
    %8 = arith.addf %3, %7 : vector<8x128xf32>
    %c0_7 = arith.constant 0 : index
    %c0_8 = arith.constant 0 : index
    %9 = vector.load %arg7[%c0_7, %c0_8] : memref<8x128xf32, #tpu.memory_space<vmem>>, vector<8x128xf32>
    tpu.vector_store %arg7[%c0_7, %c0_8], %8 {strides = array<i32>} : memref<8x128xf32, #tpu.memory_space<vmem>>, vector<8x128xf32>,
    %c0_i32_9 = arith.constant 0 : i32
    %10 = arith.cmpi eq, %arg2, %c0_i32_9 : i32
    %11 = arith.extui %10 : i1 to i32
    %c0_i32_10 = arith.constant 0 : i32
    %12 = arith.cmpi ne, %11, %c0_i32_10 : i32
    scf.if %12 {
      %c0_11 = arith.constant 0 : index
      %c0_12 = arith.constant 0 : index
      %13 = vector.load %arg7[%c0_11, %c0_12] : memref<8x128xf32, #tpu.memory_space<vmem>>, vector<8x128xf32>
      %c0_13 = arith.constant 0 : index
      %c0_14 = arith.constant 0 : index
      %c0_15 = arith.constant 0 : index
      %14 = vector.load %arg5[%c0_13, %c0_14, %c0_15] : memref<1x1x128xf32, #tpu.memory_space<vmem>>, vector<1x1x128xf32>
      %15 = vector.shape_cast %14 : vector<1x1x128xf32> to vector<1x128xf32>
      %16 = vector.broadcast %15 : vector<1x128xf32> to vector<8x128xf32>
      %17 = arith.addf %13, %16 : vector<8x128xf32>
      %c0_16 = arith.constant 0 : index
      %c0_17 = arith.constant 0 : index
      %18 = vector.load %arg6[%c0_16, %c0_17] : memref<8x128xf32, #tpu.memory_space<vmem>>, vector<8x128xf32>
      tpu.vector_store %arg6[%c0_16, %c0_17], %17 {strides = array<i32>} : memref<8x128xf32, #tpu.memory_space<vmem>>, vector<8x128xf32>,
    } else {
    }
    return
  }
  func.func @transform_0(%arg0: i32, %arg1: i32, %arg2: i32) -> (i32, i32) {
    %c0_i32 = arith.constant 0 : i32
    return %arg0, %arg2 : i32, i32
  }
  func.func @transform_1(%arg0: i32, %arg1: i32, %arg2: i32) -> (i32, i32, i32) {
    %c0_i32 = arith.constant 0 : i32
    %c0_i32_0 = arith.constant 0 : i32
    return %c0_i32, %arg2, %arg1 : i32, i32, i32
  }
  func.func @transform_2(%arg0: i32, %arg1: i32, %arg2: i32) -> (i32, i32, i32) {
    %c0_i32 = arith.constant 0 : i32
    %c0_i32_0 = arith.constant 0 : i32
    %c0_i32_1 = arith.constant 0 : i32
    return %c0_i32, %c0_i32_0, %arg1 : i32, i32, i32
  }
  func.func @transform_3(%arg0: i32, %arg1: i32, %arg2: i32) -> (i32, i32) {
    %c0_i32 = arith.constant 0 : i32
    return %arg0, %arg1 : i32, i32
  }
}

</mosaic_0001>

<llo_original>
// kernel: flatten_head_tcn_forward.1
$region0: #{flatten_head_tcn_forward.1}
  #allocation0 [shape = 'u32[]', space=smem, size = 0x4, offset = 0x4, fixed_abs, tag = 'smem constant byte address 0x4 - core index']
  #allocation1 [shape = 'u32[144,128]{1,0:T(1,128)}', space=vmem, size = 0x12000, scoped, tag = 'internal scratch']
  #allocation2 [shape = 'f32[8,128]{1,0:T(8,128)}', space=vmem, size = 0x1000, scoped, tag = 'scratch operand']
  %s0 = inlined_call_operand.vmem [shape: f32[8,256], index: 0, kind: input, shape index: {}]
  %s1 = inlined_call_operand.vmem [shape: f32[1,256,128], index: 1, kind: input, shape index: {}]
  %s2 = inlined_call_operand.vmem [shape: f32[1,1,128], index: 2, kind: input, shape index: {}]
  %s3 = inlined_call_operand.hbm [shape: f32[8,128], index: 3, kind: output, shape index: {}]
  %s4 = sld [smem:[#allocation0]]
  $region30: #{flatten_head_tcn_forward.1} parent=0
    _
  %s6 = ssub.s32 1, %s4
  %s7 = scalar_select 0, %s6, %s4
  $region1: #{flatten_head_tcn_forward.1} parent=0
    #allocation3 [shape = 'u8[4096]{0}', space=vmem, size = 0x1000, scoped, tag = 'output window, operand 0, single buffered']
    #allocation4 [shape = 's32[1]{0}', space=sflag, size = 0x4, scoped, tag = 'scoped memory for flatten_head_tcn_forward.1']
    %8 = vsyncpa [#allocation4], 0
    // Predicated region
    $region2: #{flatten_head_tcn_forward.1} parent=1 // pred_check
      _
    $region3: #{flatten_head_tcn_forward.1} parent=1 // pred_check_branch
      %10 = sbr.rel (0) target = $region5
    $region4: #{flatten_head_tcn_forward.1} parent=1 // pred_region
      _
    $region5: #{flatten_head_tcn_forward.1} parent=1 // pred_fallthru
      _
    // Predicated region
    $region6: #{flatten_head_tcn_forward.1} parent=1 // pred_check
      _
    $region7: #{flatten_head_tcn_forward.1} parent=1 // pred_check_branch
      %12 = sbr.rel (0) target = $region9
    $region8: #{flatten_head_tcn_forward.1} parent=1 // pred_region
      _
    $region9: #{flatten_head_tcn_forward.1} parent=1 // pred_fallthru
      _
    // Predicated region
    $region10: #{flatten_head_tcn_forward.1} parent=1 // pred_check
      _
    $region11: #{flatten_head_tcn_forward.1} parent=1 // pred_check_branch
      %14 = sbr.rel (0) target = $region13
    $region12: #{flatten_head_tcn_forward.1} parent=1 // pred_region
      _
    $region13: #{flatten_head_tcn_forward.1} parent=1 // pred_fallthru
      _
    %p15 = scmp.eq.s32.totalorder 0, 0
    // Predicated region
    $region14: #{flatten_head_tcn_forward.1} parent=1 // pred_check
      %p16 = pneg %p15
    $region15: #{flatten_head_tcn_forward.1} parent=1 // pred_check_branch
      %18 = sbr.rel (%p16) target = $region17
    $region16: #{flatten_head_tcn_forward.1} parent=1 // pred_region
      %19 = vst [vmem:[#allocation2] sm:$0xff] 0.0
    $region17: #{flatten_head_tcn_forward.1} parent=1 // pred_fallthru
      _
    %v20 = vld [vmem:[#allocation2] sm:$0xff]
    %v21 = vld [vmem:[%s0] sm:$0xff]
    %v22 = vld [vmem:[%s0 + $0x8] sm:$0xff]
    %v23 = vld [vmem:[%s1] sm:$0xff]
    %v24 = vld [vmem:[%s1 + $0x8] sm:$0xff]
    %v25 = vld [vmem:[%s1 + $0x10] sm:$0xff]
    %v26 = vld [vmem:[%s1 + $0x18] sm:$0xff]
    %v27 = vld [vmem:[%s1 + $0x20] sm:$0xff]
    %v28 = vld [vmem:[%s1 + $0x28] sm:$0xff]
    %v29 = vld [vmem:[%s1 + $0x30] sm:$0xff]
    %v30 = vld [vmem:[%s1 + $0x38] sm:$0xff]
    %v31 = vld [vmem:[%s1 + $0x40] sm:$0xff]
    %v32 = vld [vmem:[%s1 + $0x48] sm:$0xff]
    %v33 = vld [vmem:[%s1 + $0x50] sm:$0xff]
    %v34 = vld [vmem:[%s1 + $0x58] sm:$0xff]
    %v35 = vld [vmem:[%s1 + $0x60] sm:$0xff]
    %v36 = vld [vmem:[%s1 + $0x68] sm:$0xff]
    %v37 = vld [vmem:[%s1 + $0x70] sm:$0xff]
    %v38 = vld [vmem:[%s1 + $0x78] sm:$0xff]
    %v39 = vld [vmem:[%s1 + $0x80] sm:$0xff]
    %v40 = vld [vmem:[%s1 + $0x88] sm:$0xff]
    %v41 = vld [vmem:[%s1 + $0x90] sm:$0xff]
    %v42 = vld [vmem:[%s1 + $0x98] sm:$0xff]
    %v43 = vld [vmem:[%s1 + $0xa0] sm:$0xff]
    %v44 = vld [vmem:[%s1 + $0xa8] sm:$0xff]
    %v45 = vld [vmem:[%s1 + $0xb0] sm:$0xff]
    %v46 = vld [vmem:[%s1 + $0xb8] sm:$0xff]
    %v47 = vld [vmem:[%s1 + $0xc0] sm:$0xff]
    %v48 = vld [vmem:[%s1 + $0xc8] sm:$0xff]
    %v49 = vld [vmem:[%s1 + $0xd0] sm:$0xff]
    %v50 = vld [vmem:[%s1 + $0xd8] sm:$0xff]
    %v51 = vld [vmem:[%s1 + $0xe0] sm:$0xff]
    %v52 = vld [vmem:[%s1 + $0xe8] sm:$0xff]
    %v53 = vld [vmem:[%s1 + $0xf0] sm:$0xff]
    %v54 = vld [vmem:[%s1 + $0xf8] sm:$0xff]
    %55 = vmatprep.subr.mxu0 0.0
    %56 = vmatpush1.msra.mxu0 %v38
    %57 = vmatprep.subr.mxu0 0.0
    %58 = vmatpush1.msra.mxu0 %v37
    %59 = vmatprep.subr.mxu0 0.0
    %60 = vmatpush1.msra.mxu0 %v36
    %61 = vmatprep.subr.mxu0 0.0
    %62 = vmatpush1.msra.mxu0 %v35
    %63 = vmatprep.subr.mxu0 0.0
    %64 = vmatpush1.msra.mxu0 %v34
    %65 = vmatprep.subr.mxu0 0.0
    %66 = vmatpush1.msra.mxu0 %v33
    %67 = vmatprep.subr.mxu0 0.0
    %68 = vmatpush1.msra.mxu0 %v32
    %69 = vmatprep.subr.mxu0 0.0
    %70 = vmatpush1.msra.mxu0 %v31
    %71 = vmatprep.subr.mxu0 0.0
    %72 = vmatpush1.msra.mxu0 %v30
    %73 = vmatprep.subr.mxu0 0.0
    %74 = vmatpush1.msra.mxu0 %v29
    %75 = vmatprep.subr.mxu0 0.0
    %76 = vmatpush1.msra.mxu0 %v28
    %77 = vmatprep.subr.mxu0 0.0
    %78 = vmatpush1.msra.mxu0 %v27
    %79 = vmatprep.subr.mxu0 0.0
    %80 = vmatpush1.msra.mxu0 %v26
    %81 = vmatprep.subr.mxu0 0.0
    %82 = vmatpush1.msra.mxu0 %v25
    %83 = vmatprep.subr.mxu0 0.0
    %84 = vmatpush1.msra.mxu0 %v24
    %85 = vmatprep.subr.mxu0 0.0
    %86 = vmatpush1.msra.mxu0 %v23
    %87 = vmatprep.subr.mxu0 0.0
    %88 = vmatpush2.msra.mxu0 %v54
    %89 = vmatprep.subr.mxu0 0.0
    %90 = vmatpush2.msra.mxu0 %v53
    %91 = vmatprep.subr.mxu0 0.0
    %92 = vmatpush2.msra.mxu0 %v52
    %93 = vmatprep.subr.mxu0 0.0
    %94 = vmatpush2.msra.mxu0 %v51
    %95 = vmatprep.subr.mxu0 0.0
    %96 = vmatpush2.msra.mxu0 %v50
    %97 = vmatprep.subr.mxu0 0.0
    %98 = vmatpush2.msra.mxu0 %v49
    %99 = vmatprep.subr.mxu0 0.0
    %100 = vmatpush2.msra.mxu0 %v48
    %101 = vmatprep.subr.mxu0 0.0
    %102 = vmatpush2.msra.mxu0 %v47
    %103 = vmatprep.subr.mxu0 0.0
    %104 = vmatpush2.msra.mxu0 %v46
    %105 = vmatprep.subr.mxu0 0.0
    %106 = vmatpush2.msra.mxu0 %v45
    %107 = vmatprep.subr.mxu0 0.0
    %108 = vmatpush2.msra.mxu0 %v44
    %109 = vmatprep.subr.mxu0 0.0
    %110 = vmatpush2.msra.mxu0 %v43
    %111 = vmatprep.subr.mxu0 0.0
    %112 = vmatpush2.msra.mxu0 %v42
    %113 = vmatprep.subr.mxu0 0.0
    %114 = vmatpush2.msra.mxu0 %v41
    %115 = vmatprep.subr.mxu0 0.0
    %116 = vmatpush2.msra.mxu0 %v40
    %117 = vmatprep.subr.mxu0 0.0
    %118 = vmatpush2.msra.mxu0 %v39
    %119 = vmatprep.mubr.f32.mxu0 %v22
    %120 = vmatmul.mubr.f32.gmra.mxu0 %v21
    %v121 = vpop.f32.mrf.mxu0
    %v122 = vadd.f32 0.0, %v121
    %v123 = vpop.f32.mrf.mxu0
    %124 = vdwg.mxu0
    %v125 = vadd.f32 %v20, %v122
    %126 = vst [vmem:[#allocation2] sm:$0xff] %v125
    // Predicated region
    $region18: #{flatten_head_tcn_forward.1} parent=1 // pred_check
      %p127 = pneg %p15
    $region19: #{flatten_head_tcn_forward.1} parent=1 // pred_check_branch
      %129 = sbr.rel (%p127) target = $region21
    $region20: #{flatten_head_tcn_forward.1} parent=1 // pred_region
      %v130 = vld [vmem:[#allocation2] sm:$0xff]
      %v131 = vld [vmem:[%s2] sm:$0x1]
      %v133 = vlaneseq
      %v134 = vshrl.u32 %v133, 7
      %v135 = vsub.s32 0, %v134
      %v136 = vrot.slane %v131, %v135
      %v138 = vadd.f32 %v130, %v136
      %139 = vst [vmem:[#allocation3] sm:$0xff] %v138
    $region21: #{flatten_head_tcn_forward.1} parent=1 // pred_fallthru
      _
    // Predicated region
    $region22: #{flatten_head_tcn_forward.1} parent=1 // pred_check
      _
    $region23: #{flatten_head_tcn_forward.1} parent=1 // pred_check_branch
      %141 = sbr.rel (0) target = $region25
    $region24: #{flatten_head_tcn_forward.1} parent=1 // pred_region
      %s143 = ssub.s32 128, 128
      %144 = vsyncadd [#allocation4], %s143
      %s146 = sshll.u32 [#allocation3], 4
      %s147 = int_to_ptr.vmem [resolvable:$true] %s146
      %149 = dma.vmem_to_hbm [thread:$0]  %s147, 128, %s3, [#allocation4]
    $region25: #{flatten_head_tcn_forward.1} parent=1 // pred_fallthru
      _
    // Predicated region
    $region26: #{flatten_head_tcn_forward.1} parent=1 // pred_check
      _
    $region27: #{flatten_head_tcn_forward.1} parent=1 // pred_check_branch
      %151 = sbr.rel (0) target = $region29
    $region28: #{flatten_head_tcn_forward.1} parent=1 // pred_region
      %152 = dma.done [#allocation4], 128
    $region29: #{flatten_head_tcn_forward.1} parent=1 // pred_fallthru
      _
    %153 = vsyncpa [#allocation4], 1

</llo_original>
